<compile_context>
chip_gen: v5e
topology: v5e:2x2
jax: 0.10.0
libtpu: 0.0.40
codegen_flags: <defaults>
</compile_context>

<pallas_src>
import re

import jax
import jax.numpy as jnp
from jax.experimental import pallas as pl
from jax.experimental.pallas import tpu as pltpu


N_BITS = 2
H_CLIP = 1.0
K_SCALE = (2 ** N_BITS - 1) / (2.0 * H_CLIP)   # 1.5 for n_bits=2, H=1

LANE = 128
_SPLIT_BYTES = 1 << 20          # shard across TensorCores once data exceeds ~1 MiB
_RAGGED_SMALL_ELEMS = 1 << 16   # lane-sparse ragged tensors below this skip the pad path


def _round_up(v, m):
    return ((v + m - 1) // m) * m


def _tpu_generation():
    try:
        kind = jax.devices()[0].device_kind
    except Exception:
        return 0
    m = re.search(r"(\d+)", kind)
    return int(m.group(1)) if m else 0


_GEN = _tpu_generation()
if _GEN >= 7:
    _TM_MAX = 16384   # 8 MiB f32 block: amortizes ~0.35us/step overhead at ~3.2 TB/s HBM
    _NUM_TC = 2       # two TensorCores share the "parallel" grid axis
elif _GEN in (4, 5, 6):
    _TM_MAX = 8192    # 4 MiB f32 block; 16 MiB double-buffered (vmem limit raised below)
    _NUM_TC = 1
else:
    _TM_MAX = 4096    # unknown / old generation: conservative
    _NUM_TC = 1


# ----------------------------------------------------------------------------- kernel


def _quant_act_kernel(x_ref, o_ref):
    x = x_ref[...].astype(jnp.float32)
    # hardtanh == clamp(x, -1, 1); Quantize's clamp(-H, H) is identical for H=1
    y = jnp.clip(x, -H_CLIP, H_CLIP)
    if N_BITS == 1:
        # matches torch's `> 0` (x == 0 maps to -H); dead at default n_bits=2
        q = jnp.where(y > 0, H_CLIP, -H_CLIP)
    else:
        # jnp.round matches torch.round (round-half-to-even); keep the divide so the
        # result is bit-exact with a divide-based reference (kernel is HBM-bound).
        q = jnp.round((y + H_CLIP) * K_SCALE) / K_SCALE - H_CLIP
    o_ref[...] = q.astype(o_ref.dtype)


# --------------------------------------------------------------------------- helpers


def _compiler_params(per_buffer_bytes):
    # in + out, each double-buffered -> 4 live buffers; + headroom for compiler scratch.
    need = 4 * per_buffer_bytes + (4 << 20)
    need = max(16 << 20, min(need, 48 << 20))   # 48 MiB stays under v7x's 64 MiB physical
    return pltpu.CompilerParams(
        dimension_semantics=("parallel",),
        vmem_limit_bytes=int(need),
    )


def _choose_block_rows(rows, itemsize):
    """Row-block size for the lane-dense (rows, 128) slab (multiple of 8, or == rows)."""
    data_bytes = rows * LANE * itemsize
    if _NUM_TC > 1 and data_bytes > _SPLIT_BYTES:
        # Guarantee an even number (>= num cores) of grid steps so both TensorCores
        # get work on v7x; otherwise grid=(1,) would leave one core idle.
        nblk = max(_NUM_TC, pl.cdiv(rows, _TM_MAX))
        nblk = _round_up(nblk, _NUM_TC)
        return min(_TM_MAX, _round_up(pl.cdiv(rows, nblk), 8))
    return rows if rows <= _TM_MAX else _TM_MAX


def _quant_bulk_2d(x2d, inplace=False, block_rows=None):
    """Run the kernel over a lane-dense (rows, 128) slab."""
    rows = x2d.shape[0]
    dtype = x2d.dtype
    itemsize = jnp.dtype(dtype).itemsize

    tm = block_rows if block_rows is not None else _choose_block_rows(rows, itemsize)
    tm = min(tm, rows)
    grid = (pl.cdiv(rows, tm),)

    n_elems = rows * LANE
    cost = pl.CostEstimate(
        flops=6 * n_elems,
        transcendentals=n_elems,
        bytes_accessed=2 * n_elems * itemsize,
    )
    buf_bytes = tm * LANE * itemsize

    return pl.pallas_call(
        _quant_act_kernel,
        out_shape=jax.ShapeDtypeStruct((rows, LANE), dtype),
        grid_spec=pltpu.PrefetchScalarGridSpec(
            num_scalar_prefetch=0,
            grid=grid,
            in_specs=[pl.BlockSpec((tm, LANE), lambda i: (i, 0))],
            out_specs=pl.BlockSpec((tm, LANE), lambda i: (i, 0)),
        ),
        compiler_params=_compiler_params(buf_bytes),
        cost_estimate=cost,
        input_output_aliases=({0: 0} if inplace else {}),
    )(x2d)


def _quant_lastdim_2d(x2d, inplace=False):
    """Ragged path: (rows, last_dim) with a full-extent lane block (no copies, masked stores)."""
    rows, cols = x2d.shape
    itemsize = jnp.dtype(x2d.dtype).itemsize
    # VMEM footprint of a (tm, cols) block is tm * round_up(cols, 128) * itemsize.
    per_row_vmem = _round_up(cols, LANE) * itemsize
    cap = max(8, ((2 << 20) // per_row_vmem) // 8 * 8)
    tm = rows if rows <= cap else cap
    grid = (pl.cdiv(rows, tm),)

    return pl.pallas_call(
        _quant_act_kernel,
        out_shape=jax.ShapeDtypeStruct((rows, cols), x2d.dtype),
        grid_spec=pltpu.PrefetchScalarGridSpec(
            num_scalar_prefetch=0,
            grid=grid,
            in_specs=[pl.BlockSpec((tm, cols), lambda i: (i, 0))],
            out_specs=pl.BlockSpec((tm, cols), lambda i: (i, 0)),
        ),
        compiler_params=_compiler_params(tm * per_row_vmem),
        input_output_aliases=({0: 0} if inplace else {}),
    )(x2d)


# --------------------------------------------------------------------------- wrapper


def quantize_act_layer(x, inplace=False):
    """Elementwise quantized-activation forward for an NCHW (or any-shaped) tensor."""
    orig_shape = x.shape
    total = x.size
    if total == 0:
        return x

    if total % LANE == 0:
        # Common case (typical conv activations): zero extra HBM copies.
        out2d = _quant_bulk_2d(x.reshape(total // LANE, LANE), inplace=inplace)
        return out2d.reshape(orig_shape)

    # Ragged numel (rare). Prefer the zero-copy (rows, last_dim) path whenever the
    # lane utilisation is acceptable (cols >= 64) or the tensor is small.
    if x.ndim >= 2 and (orig_shape[-1] >= 64 or total <= _RAGGED_SMALL_ELEMS):
        rows = total // orig_shape[-1]
        out2d = _quant_lastdim_2d(x.reshape(rows, orig_shape[-1]), inplace=inplace)
        return out2d.reshape(orig_shape)

    # Large lane-sparse ragged tensor (or 0/1-D ragged): pad once to a multiple of
    # 128, run the lane-dense kernel, slice back. (No concatenate of the bulk.)
    flat = x.reshape(-1)
    pad = (-total) % LANE
    padded = jnp.pad(flat, (0, pad))
    out2d = _quant_bulk_2d(padded.reshape(-1, LANE), inplace=inplace)
    return out2d.reshape(-1)[:total].reshape(orig_shape)


# ------------------------------------------------------------------------- reference


def _reference(x):
    y = jnp.clip(x, -H_CLIP, H_CLIP)
    k = (2 ** N_BITS - 1) / (2.0 * H_CLIP)
    return jnp.round((y + H_CLIP) * k) / k - H_CLIP


if __name__ == "__main__":
    key = jax.random.PRNGKey(0)
    k1, k2, k3 = jax.random.split(key, 3)

    # 1) main case: small NCHW activation, numel % 128 == 0 -> lane-dense fast path
    x = jax.random.normal(key, (2, 4, 16, 16), dtype=jnp.float32) * 2.0
    out = jax.block_until_ready(quantize_act_layer(x))
    assert out.shape == x.shape and out.dtype == x.dtype
    assert jnp.max(jnp.abs(out - _reference(x))) < 1e-6

    # 2) module's inplace=True flavour (aliased output buffer)
    out_ip = jax.block_until_ready(quantize_act_layer(x, inplace=True))
    assert jnp.max(jnp.abs(out_ip - _reference(x))) < 1e-6

    # 3) ragged numel (numel % 128 != 0): zero-copy (rows, last_dim) path
    x_rag = jax.random.normal(k1, (3, 5, 7, 7), dtype=jnp.float32) * 2.0
    out_rag = jax.block_until_ready(quantize_act_layer(x_rag))
    assert out_rag.shape == x_rag.shape
    assert jnp.max(jnp.abs(out_rag - _reference(x_rag))) < 1e-6

    # 4) bigger activation: generation-aware block choice (>= 2 even grid steps on v7x)
    x_big = jax.random.normal(k2, (2, 65, 64, 64), dtype=jnp.float32) * 2.0
    out_big = jax.block_until_ready(quantize_act_layer(x_big))
    assert jnp.max(jnp.abs(out_big - _reference(x_big))) < 1e-6

    # 5) forced multi-block grid with a masked partial last block (chip-independent coverage)
    rows = x_big.size // LANE
    out_blk = jax.block_until_ready(
        _quant_bulk_2d(x_big.reshape(rows, LANE), block_rows=512)
    ).reshape(x_big.shape)
    assert jnp.max(jnp.abs(out_blk - _reference(x_big))) < 1e-6

    # 6) large lane-sparse ragged tensor: pad-once fallback path
    x_pad = jax.random.normal(k3, (9000, 3, 7), dtype=jnp.float32) * 2.0
    out_pad = jax.block_until_ready(quantize_act_layer(x_pad))
    assert jnp.max(jnp.abs(out_pad - _reference(x_pad))) < 1e-6

    print("KERNEL_OK")
</pallas_src>

<mosaic_0001>
module attributes {stable_mosaic.version = 11 : i64} {
  func.func @_quant_act_kernel(%arg0: i32, %arg1: memref<16x128xf32, #tpu.memory_space<vmem>>, %arg2: memref<16x128xf32, #tpu.memory_space<vmem>>) attributes {dimension_semantics = [#tpu.dimension_semantics<parallel>], iteration_bounds = array<i64: 1>, scalar_prefetch = 0 : i64, scratch_operands = 0 : i64, tpu.core_type = #tpu.core_type<tc>, window_params = [{transform_indices = @transform_0, window_bounds = array<i64: 16, 128>}, {transform_indices = @transform_1, window_bounds = array<i64: 16, 128>}]} {
    %c0 = arith.constant 0 : index
    %c0_0 = arith.constant 0 : index
    %0 = vector.load %arg1[%c0, %c0_0] : memref<16x128xf32, #tpu.memory_space<vmem>>, vector<16x128xf32>
    %cst = arith.constant -1.000000e+00 : f32
    %cst_1 = arith.constant 1.000000e+00 : f32
    %1 = vector.broadcast %cst : f32 to vector<16x128xf32>
    %2 = arith.maximumf %1, %0 : vector<16x128xf32>
    %3 = vector.broadcast %cst_1 : f32 to vector<16x128xf32>
    %4 = arith.minimumf %3, %2 : vector<16x128xf32>
    %cst_2 = arith.constant 1.000000e+00 : f32
    %5 = vector.broadcast %cst_2 : f32 to vector<16x128xf32>
    %6 = arith.addf %4, %5 : vector<16x128xf32>
    %cst_3 = arith.constant 1.500000e+00 : f32
    %7 = vector.broadcast %cst_3 : f32 to vector<16x128xf32>
    %8 = arith.mulf %6, %7 : vector<16x128xf32>
    %9 = math.roundeven %8 : vector<16x128xf32>
    %cst_4 = arith.constant 1.500000e+00 : f32
    %10 = vector.broadcast %cst_4 : f32 to vector<16x128xf32>
    %11 = arith.divf %9, %10 : vector<16x128xf32>
    %cst_5 = arith.constant 1.000000e+00 : f32
    %12 = vector.broadcast %cst_5 : f32 to vector<16x128xf32>
    %13 = arith.subf %11, %12 : vector<16x128xf32>
    %c0_6 = arith.constant 0 : index
    %c0_7 = arith.constant 0 : index
    %14 = vector.load %arg2[%c0_6, %c0_7] : memref<16x128xf32, #tpu.memory_space<vmem>>, vector<16x128xf32>
    tpu.vector_store %arg2[%c0_6, %c0_7], %13 {strides = array<i32>} : memref<16x128xf32, #tpu.memory_space<vmem>>, vector<16x128xf32>,
    return
  }
  func.func @transform_0(%arg0: i32) -> (i32, i32) {
    %c0_i32 = arith.constant 0 : i32
    %c0_i32_0 = arith.constant 0 : i32
    return %arg0, %c0_i32 : i32, i32
  }
  func.func @transform_1(%arg0: i32) -> (i32, i32) {
    %c0_i32 = arith.constant 0 : i32
    %c0_i32_0 = arith.constant 0 : i32
    return %arg0, %c0_i32 : i32, i32
  }
}

</mosaic_0001>

<llo_original>
// kernel: tpu_custom_call.1
$region0: #{tpu_custom_call.1}
  #allocation0 [shape = 'u32[]', space=smem, size = 0x4, offset = 0x4, fixed_abs, tag = 'smem constant byte address 0x4 - core index']
  #allocation1 [shape = 'u32[72,128]{1,0:T(1,128)}', space=vmem, size = 0x9000, scoped, tag = 'internal scratch']
  %s0 = inlined_call_operand.hbm [shape: f32[16,128], index: 0, kind: input, shape index: {}]
  %s1 = inlined_call_operand.hbm [shape: f32[16,128], index: 1, kind: output, shape index: {}]
  %s2 = sld [smem:[#allocation0]]
  $region18: #{tpu_custom_call.1} parent=0
    _
  %s4 = ssub.s32 1, %s2
  %s5 = scalar_select 0, %s4, %s2
  $region1: #{tpu_custom_call.1} parent=0
    #allocation2 [shape = 'u8[8192]{0}', space=vmem, size = 0x2000, scoped, tag = 'input window, operand 0, single buffered']
    #allocation3 [shape = 's32[1]{0}', space=sflag, size = 0x4, scoped, tag = 'scoped memory for tpu_custom_call.1']
    #allocation4 [shape = 's32[1]{0}', space=sflag, size = 0x4, scoped, tag = 'scoped memory for tpu_custom_call.1']
    #allocation5 [shape = 'u8[8192]{0}', space=vmem, size = 0x2000, scoped, tag = 'output window, operand 0, single buffered']
    %6 = vsyncpa [#allocation3], 0
    %7 = vsyncpa [#allocation4], 0
    // Predicated region
    $region2: #{tpu_custom_call.1} parent=1 // pred_check
      _
    $region3: #{tpu_custom_call.1} parent=1 // pred_check_branch
      %9 = sbr.rel (0) target = $region5
    $region4: #{tpu_custom_call.1} parent=1 // pred_region
      %11 = vsyncadd [#allocation3], 0
      %s12 = sshll.u32 %s0, 4
      %s13 = int_to_ptr.hbm [resolvable:$true] %s12
      %s14 = sshll.u32 [#allocation2], 4
      %s15 = int_to_ptr.vmem [resolvable:$true] %s14
      %20 = dma.hbm_to_vmem [thread:$0]  %s13, 256, %s15, [#allocation3], 128, 128, 8
    $region5: #{tpu_custom_call.1} parent=1 // pred_fallthru
      _
    // Predicated region
    $region6: #{tpu_custom_call.1} parent=1 // pred_check
      _
    $region7: #{tpu_custom_call.1} parent=1 // pred_check_branch
      %22 = sbr.rel (0) target = $region9
    $region8: #{tpu_custom_call.1} parent=1 // pred_region
      %24 = dma.done [#allocation3], 256
    $region9: #{tpu_custom_call.1} parent=1 // pred_fallthru
      _
    %v25 = vld [vmem:[#allocation2] sm:$0xff]
    %v26 = vld [vmem:[#allocation2 + $0x8] sm:$0xff]
    %v27 = vmax.f32 %v25, -1.0
    %v28 = vmax.f32 %v26, -1.0
    %v29 = vmin.f32 %v27, 1.0
    %v30 = vmin.f32 %v28, 1.0
    %v31 = vadd.f32 %v29, 1.0
    %v32 = vadd.f32 %v30, 1.0
    %v33 = vmul.f32 %v31, 1.5
    %v34 = vmul.f32 %v32, 1.5
    %v35 = vround.ne.pseudo %v33
    %v36 = vround.ne.pseudo %v34
    %v37 = vrcp.pop 1.5
    %v38 = vmul.f32 1.5, %v37
    %v39 = vsub.f32 1.0, %v38
    %v40 = vmul.f32 %v37, %v39
    %v41 = vadd.f32 %v37, %v40
    %vm42 = vweird.f32 %v37
    %v43 = vsel %vm42, %v37, %v41
    %v44 = vmul.f32 %v35, %v43
    %v45 = vmul.f32 %v36, %v43
    %v46 = vsub.f32 %v44, 1.0
    %v47 = vsub.f32 %v45, 1.0
    %48 = vst [vmem:[#allocation5] sm:$0xff] %v46
    %49 = vst [vmem:[#allocation5 + $0x8] sm:$0xff] %v47
    // Predicated region
    $region10: #{tpu_custom_call.1} parent=1 // pred_check
      _
    $region11: #{tpu_custom_call.1} parent=1 // pred_check_branch
      %51 = sbr.rel (0) target = $region13
    $region12: #{tpu_custom_call.1} parent=1 // pred_region
      %53 = vsyncadd [#allocation4], 0
      %s54 = sshll.u32 [#allocation5], 4
      %s55 = int_to_ptr.vmem [resolvable:$true] %s54
      %s56 = sshll.u32 %s1, 4
      %s57 = int_to_ptr.hbm [resolvable:$true] %s56
      %62 = dma.vmem_to_hbm [thread:$0]  %s55, 256, %s57, [#allocation4], 128, 128, 8
    $region13: #{tpu_custom_call.1} parent=1 // pred_fallthru
      _
    // Predicated region
    $region14: #{tpu_custom_call.1} parent=1 // pred_check
      _
    $region15: #{tpu_custom_call.1} parent=1 // pred_check_branch
      %64 = sbr.rel (0) target = $region17
    $region16: #{tpu_custom_call.1} parent=1 // pred_region
      %66 = dma.done [#allocation4], 256
    $region17: #{tpu_custom_call.1} parent=1 // pred_fallthru
      _
    %67 = vsyncpa [#allocation3], 1
    %68 = vsyncpa [#allocation4], 1

</llo_original>
